<compile_context>
chip_gen: v5e
topology: v5e:2x2
jax: 0.10.0
libtpu: 0.0.40
codegen_flags: <defaults>
</compile_context>

<pallas_src>
import jax
import jax.numpy as jnp
from jax.experimental import pallas as pl
from jax.experimental.pallas import tpu as pltpu

MAX_LENGTH = 12


def attn_decoder_kernel(
    ids_ref, hid_ref, enc_ref, emb_tbl_ref,
    w_attn_ref, b_attn_ref,
    w_comb_ref, b_comb_ref,
    w_ih_ref, b_ih_ref, w_hh_ref, b_hh_ref,
    w1_ref, b1_ref, w2_ref, b2_ref, w3_ref, b3_ref, w4_ref, b4_ref,
    out_ref, hid_out_ref, attn_w_ref,
):
    B, H = hid_ref.shape
    V = emb_tbl_ref.shape[0]

    hid = hid_ref[...]                                   # (B, H)
    enc = enc_ref[...]                                   # (B, L, H)

    # ---- embedding lookup as one-hot MXU matmul (gather-free) ----
    ids = ids_ref[...]                                   # (B, 1) int32
    iota = jax.lax.broadcasted_iota(jnp.int32, (B, V), 1)
    one_hot = (iota == ids).astype(jnp.float32)          # (B, V)
    emb = jnp.dot(one_hot, emb_tbl_ref[...],
                  preferred_element_type=jnp.float32)    # (B, H)

    def sigmoid(v):
        # 1 / (1 + exp(-v)) with exp + reciprocal both on the EUP slot.
        return pl.reciprocal(1.0 + jnp.exp(-v), approx=True)

    # ---- attention scores: split accumulating matmuls (no lane concat) ----
    logits = (jnp.dot(emb, w_attn_ref[0:H, :], preferred_element_type=jnp.float32)
              + jnp.dot(hid, w_attn_ref[H:2 * H, :], preferred_element_type=jnp.float32)
              + b_attn_ref[...])                         # (B, L)
    logits = logits - jnp.max(logits, axis=-1, keepdims=True)
    e = jnp.exp(logits)
    attn_w = e * pl.reciprocal(jnp.sum(e, axis=-1, keepdims=True), approx=True)
    attn_w_ref[...] = attn_w

    # ---- bmm: (B,1,L) @ (B,L,H) -> (B,H) on the MXU ----
    attn_applied = jnp.einsum(
        'bql,blh->bqh', attn_w[:, None, :], enc,
        preferred_element_type=jnp.float32)[:, 0, :]     # (B, H)

    # ---- combine + relu: split accumulating matmuls (no lane concat) ----
    x = (jnp.dot(emb, w_comb_ref[0:H, :], preferred_element_type=jnp.float32)
         + jnp.dot(attn_applied, w_comb_ref[H:2 * H, :],
                   preferred_element_type=jnp.float32)
         + b_comb_ref[...])                              # (B, H)
    x = jnp.maximum(x, 0.0)

    # ---- GRU cell, fused gates (PyTorch gate order r, z, n along lanes) ----
    gi = jnp.dot(x, w_ih_ref[...], preferred_element_type=jnp.float32) + b_ih_ref[...]   # (B, 3H)
    gh = jnp.dot(hid, w_hh_ref[...], preferred_element_type=jnp.float32) + b_hh_ref[...]  # (B, 3H)
    g = gi + gh
    r = sigmoid(g[:, 0:H])
    z = sigmoid(g[:, H:2 * H])
    n = jnp.tanh(gi[:, 2 * H:3 * H] + r * gh[:, 2 * H:3 * H])
    h_new = (1.0 - z) * n + z * hid                      # (B, H)
    hid_out_ref[...] = h_new

    # ---- output MLP: 3 x (Linear -> Tanh), then Linear ----
    h1 = jnp.tanh(jnp.dot(h_new, w1_ref[...],
                          preferred_element_type=jnp.float32) + b1_ref[...])
    h2 = jnp.tanh(jnp.dot(h1, w2_ref[...],
                          preferred_element_type=jnp.float32) + b2_ref[...])
    h3 = jnp.tanh(jnp.dot(h2, w3_ref[...],
                          preferred_element_type=jnp.float32) + b3_ref[...])
    out_ref[...] = jnp.dot(h3, w4_ref[...],
                           preferred_element_type=jnp.float32) + b4_ref[...]


def init_params(key, hidden_size, output_size, max_length, mlp_size=32):
    H, V, L, S = hidden_size, output_size, max_length, mlp_size
    keys = jax.random.split(key, 20)
    s = 0.1
    p = {}
    p["embedding"] = jax.random.normal(keys[0], (V, H), jnp.float32) * s
    p["w_attn"] = jax.random.normal(keys[1], (2 * H, L), jnp.float32) * s
    p["b_attn"] = jax.random.normal(keys[2], (1, L), jnp.float32) * s
    p["w_comb"] = jax.random.normal(keys[3], (2 * H, H), jnp.float32) * s
    p["b_comb"] = jax.random.normal(keys[4], (1, H), jnp.float32) * s
    # GRU weights: gates (r, z, n) concatenated along lanes, stored for x @ W
    p["w_ih"] = jax.random.normal(keys[5], (H, 3 * H), jnp.float32) * s
    p["b_ih"] = jax.random.normal(keys[6], (1, 3 * H), jnp.float32) * s
    p["w_hh"] = jax.random.normal(keys[7], (H, 3 * H), jnp.float32) * s
    p["b_hh"] = jax.random.normal(keys[8], (1, 3 * H), jnp.float32) * s
    # MLP: H -> S -> S -> S -> V
    p["w1"] = jax.random.normal(keys[9], (H, S), jnp.float32) * s
    p["b1"] = jax.random.normal(keys[10], (1, S), jnp.float32) * s
    p["w2"] = jax.random.normal(keys[11], (S, S), jnp.float32) * s
    p["b2"] = jax.random.normal(keys[12], (1, S), jnp.float32) * s
    p["w3"] = jax.random.normal(keys[13], (S, S), jnp.float32) * s
    p["b3"] = jax.random.normal(keys[14], (1, S), jnp.float32) * s
    p["w4"] = jax.random.normal(keys[15], (S, V), jnp.float32) * s
    p["b4"] = jax.random.normal(keys[16], (1, V), jnp.float32) * s
    return p


def attn_decoder_forward(input_ids, hidden, encoder_outputs, params):
    """input_ids: (B,) int32; hidden: (B,1,H); encoder_outputs: (B,L,H)."""
    B = input_ids.shape[0]
    H = params["w_comb"].shape[1]
    L = encoder_outputs.shape[1]
    V = params["w4"].shape[1]

    ids2d = input_ids.reshape(B, 1).astype(jnp.int32)
    hid = hidden.reshape(B, H)

    ins = (ids2d, hid, encoder_outputs, params["embedding"],
           params["w_attn"], params["b_attn"],
           params["w_comb"], params["b_comb"],
           params["w_ih"], params["b_ih"], params["w_hh"], params["b_hh"],
           params["w1"], params["b1"], params["w2"], params["b2"],
           params["w3"], params["b3"], params["w4"], params["b4"])

    vmem = pl.BlockSpec(memory_space=pltpu.MemorySpace.VMEM)
    out, hid_out, attn_w = pl.pallas_call(
        attn_decoder_kernel,
        out_shape=(jax.ShapeDtypeStruct((B, V), jnp.float32),
                   jax.ShapeDtypeStruct((B, H), jnp.float32),
                   jax.ShapeDtypeStruct((B, L), jnp.float32)),
        in_specs=[vmem] * len(ins),
        out_specs=(vmem, vmem, vmem),
    )(*ins)

    # restore PyTorch shape conventions
    output = out[None, :, :]           # (1, B, V)
    hidden_out = hid_out[None, :, :]   # (1, B, H)
    attn_weights = attn_w[:, None, :]  # (B, 1, L)
    return output, hidden_out, attn_weights


def attn_decoder_reference(input_ids, hidden, encoder_outputs, params):
    """Pure-JAX reference with identical math, for correctness checking."""
    emb = params["embedding"][input_ids]                        # (B, H)
    B, H = emb.shape
    hid = hidden.reshape(B, H)
    cat1 = jnp.concatenate([emb, hid], axis=-1)
    attn_w = jax.nn.softmax(cat1 @ params["w_attn"] + params["b_attn"], axis=-1)
    attn_applied = jnp.einsum('bl,blh->bh', attn_w, encoder_outputs)
    cat2 = jnp.concatenate([emb, attn_applied], axis=-1)
    x = jax.nn.relu(cat2 @ params["w_comb"] + params["b_comb"])
    gi = x @ params["w_ih"] + params["b_ih"]
    gh = hid @ params["w_hh"] + params["b_hh"]
    r = jax.nn.sigmoid(gi[:, :H] + gh[:, :H])
    z = jax.nn.sigmoid(gi[:, H:2 * H] + gh[:, H:2 * H])
    n = jnp.tanh(gi[:, 2 * H:] + r * gh[:, 2 * H:])
    h_new = (1.0 - z) * n + z * hid
    h1 = jnp.tanh(h_new @ params["w1"] + params["b1"])
    h2 = jnp.tanh(h1 @ params["w2"] + params["b2"])
    h3 = jnp.tanh(h2 @ params["w3"] + params["b3"])
    out = h3 @ params["w4"] + params["b4"]
    return out[None, :, :], h_new[None, :, :], attn_w[:, None, :]


if __name__ == "__main__":
    hidden_size = 32
    output_size = 16
    max_length = MAX_LENGTH
    batch = 2

    key = jax.random.PRNGKey(0)
    k_params, k_hid, k_enc = jax.random.split(key, 3)

    params = init_params(k_params, hidden_size, output_size, max_length)

    input_ids = jnp.array([3, 7], dtype=jnp.int32)                       # (B,)
    hidden = jax.random.normal(k_hid, (batch, 1, hidden_size), jnp.float32)
    encoder_outputs = jax.random.normal(
        k_enc, (batch, max_length, hidden_size), jnp.float32)

    output, hidden_out, attn_weights = attn_decoder_forward(
        input_ids, hidden, encoder_outputs, params)
    jax.block_until_ready((output, hidden_out, attn_weights))

    assert output.shape == (1, batch, output_size)
    assert hidden_out.shape == (1, batch, hidden_size)
    assert attn_weights.shape == (batch, 1, max_length)

    # correctness check vs. pure-JAX reference (loose tol: approx EUP recips)
    ref_out, ref_hid, ref_attn = attn_decoder_reference(
        input_ids, hidden, encoder_outputs, params)
    assert jnp.max(jnp.abs(output - ref_out)) < 1e-2
    assert jnp.max(jnp.abs(hidden_out - ref_hid)) < 1e-2
    assert jnp.max(jnp.abs(attn_weights - ref_attn)) < 1e-2

    print("KERNEL_OK")
</pallas_src>

<mosaic_0001>
module attributes {stable_mosaic.version = 11 : i64} {
  func.func @attn_decoder_kernel(%arg0: memref<2x1xi32, #tpu.memory_space<vmem>>, %arg1: memref<2x32xf32, #tpu.memory_space<vmem>>, %arg2: memref<2x12x32xf32, #tpu.memory_space<vmem>>, %arg3: memref<16x32xf32, #tpu.memory_space<vmem>>, %arg4: memref<64x12xf32, #tpu.memory_space<vmem>>, %arg5: memref<1x12xf32, #tpu.memory_space<vmem>>, %arg6: memref<64x32xf32, #tpu.memory_space<vmem>>, %arg7: memref<1x32xf32, #tpu.memory_space<vmem>>, %arg8: memref<32x96xf32, #tpu.memory_space<vmem>>, %arg9: memref<1x96xf32, #tpu.memory_space<vmem>>, %arg10: memref<32x96xf32, #tpu.memory_space<vmem>>, %arg11: memref<1x96xf32, #tpu.memory_space<vmem>>, %arg12: memref<32x32xf32, #tpu.memory_space<vmem>>, %arg13: memref<1x32xf32, #tpu.memory_space<vmem>>, %arg14: memref<32x32xf32, #tpu.memory_space<vmem>>, %arg15: memref<1x32xf32, #tpu.memory_space<vmem>>, %arg16: memref<32x32xf32, #tpu.memory_space<vmem>>, %arg17: memref<1x32xf32, #tpu.memory_space<vmem>>, %arg18: memref<32x16xf32, #tpu.memory_space<vmem>>, %arg19: memref<1x16xf32, #tpu.memory_space<vmem>>, %arg20: memref<2x16xf32, #tpu.memory_space<vmem>>, %arg21: memref<2x32xf32, #tpu.memory_space<vmem>>, %arg22: memref<2x12xf32, #tpu.memory_space<vmem>>) attributes {dimension_semantics = [], scalar_prefetch = 0 : i64, scratch_operands = 0 : i64, tpu.core_type = #tpu.core_type<tc>} {
    %c0 = arith.constant 0 : index
    %c0_0 = arith.constant 0 : index
    %0 = vector.load %arg1[%c0, %c0_0] : memref<2x32xf32, #tpu.memory_space<vmem>>, vector<2x32xf32>
    %c0_1 = arith.constant 0 : index
    %c0_2 = arith.constant 0 : index
    %c0_3 = arith.constant 0 : index
    %1 = vector.load %arg2[%c0_1, %c0_2, %c0_3] : memref<2x12x32xf32, #tpu.memory_space<vmem>>, vector<2x12x32xf32>
    %c0_4 = arith.constant 0 : index
    %c0_5 = arith.constant 0 : index
    %2 = vector.load %arg0[%c0_4, %c0_5] : memref<2x1xi32, #tpu.memory_space<vmem>>, vector<2x1xi32>
    %3 = tpu.iota {dimensions = array<i32: 1>} : vector<2x16xi32>
    %4 = vector.broadcast %2 : vector<2x1xi32> to vector<2x16xi32>
    %5 = arith.cmpi eq, %3, %4 : vector<2x16xi32>
    %6 = arith.extui %5 : vector<2x16xi1> to vector<2x16xi32>
    %7 = arith.sitofp %6 : vector<2x16xi32> to vector<2x16xf32>
    %c0_6 = arith.constant 0 : index
    %c0_7 = arith.constant 0 : index
    %8 = vector.load %arg3[%c0_6, %c0_7] : memref<16x32xf32, #tpu.memory_space<vmem>>, vector<16x32xf32>
    %cst = arith.constant dense<0.000000e+00> : vector<2x32xf32>
    %9 = tpu.matmul %7, %8, %cst {dimension_numbers = #tpu.dot_dimension_numbers<[1], [0], [0], [1], [0, 0, 1, 1], [], []>} : vector<2x16xf32>, vector<16x32xf32>, vector<2x32xf32> -> vector<2x32xf32>
    %c0_8 = arith.constant 0 : index
    %c0_9 = arith.constant 0 : index
    %10 = vector.load %arg4[%c0_8, %c0_9] : memref<64x12xf32, #tpu.memory_space<vmem>>, vector<32x12xf32>
    %cst_10 = arith.constant dense<0.000000e+00> : vector<2x12xf32>
    %11 = tpu.matmul %9, %10, %cst_10 {dimension_numbers = #tpu.dot_dimension_numbers<[1], [0], [0], [1], [0, 0, 1, 1], [], []>} : vector<2x32xf32>, vector<32x12xf32>, vector<2x12xf32> -> vector<2x12xf32>
    %c32 = arith.constant 32 : index
    %c0_11 = arith.constant 0 : index
    %12 = vector.load %arg4[%c32, %c0_11] : memref<64x12xf32, #tpu.memory_space<vmem>>, vector<32x12xf32>
    %cst_12 = arith.constant dense<0.000000e+00> : vector<2x12xf32>
    %13 = tpu.matmul %0, %12, %cst_12 {dimension_numbers = #tpu.dot_dimension_numbers<[1], [0], [0], [1], [0, 0, 1, 1], [], []>} : vector<2x32xf32>, vector<32x12xf32>, vector<2x12xf32> -> vector<2x12xf32>
    %14 = arith.addf %11, %13 : vector<2x12xf32>
    %c0_13 = arith.constant 0 : index
    %c0_14 = arith.constant 0 : index
    %15 = vector.load %arg5[%c0_13, %c0_14] : memref<1x12xf32, #tpu.memory_space<vmem>>, vector<1x12xf32>
    %16 = vector.broadcast %15 : vector<1x12xf32> to vector<2x12xf32>
    %17 = arith.addf %14, %16 : vector<2x12xf32>
    %cst_15 = arith.constant dense<0xFF800000> : vector<2xf32>
    %18 = vector.multi_reduction <maximumf>, %17, %cst_15 [1] : vector<2x12xf32> to vector<2xf32>
    %19 = vector.shape_cast %18 : vector<2xf32> to vector<2x1xf32>
    %20 = vector.broadcast %19 : vector<2x1xf32> to vector<2x12xf32>
    %21 = arith.subf %17, %20 : vector<2x12xf32>
    %22 = math.exp %21 : vector<2x12xf32>
    %cst_16 = arith.constant dense<0.000000e+00> : vector<2xf32>
    %23 = vector.multi_reduction <add>, %22, %cst_16 [1] : vector<2x12xf32> to vector<2xf32>
    %24 = vector.shape_cast %23 : vector<2xf32> to vector<2x1xf32>
    %25 = tpu.reciprocal %24 {approx = true} : vector<2x1xf32> -> vector<2x1xf32>
    %26 = vector.broadcast %25 : vector<2x1xf32> to vector<2x12xf32>
    %27 = arith.mulf %22, %26 : vector<2x12xf32>
    %c0_17 = arith.constant 0 : index
    %c0_18 = arith.constant 0 : index
    %28 = vector.load %arg22[%c0_17, %c0_18] : memref<2x12xf32, #tpu.memory_space<vmem>>, vector<2x12xf32>
    tpu.vector_store %arg22[%c0_17, %c0_18], %27 {strides = array<i32>} : memref<2x12xf32, #tpu.memory_space<vmem>>, vector<2x12xf32>,
    %29 = vector.shape_cast %27 : vector<2x12xf32> to vector<2x1x12xf32>
    "tpu.trace_start"() <{level = 10 : i32, message = "bql,blh->bqh"}> : () -> ()
    %cst_19 = arith.constant dense<0.000000e+00> : vector<2x1x32xf32>
    %30 = tpu.matmul %29, %1, %cst_19 {dimension_numbers = #tpu.dot_dimension_numbers<[2], [1], [1], [2], [0, 0, 0, 1, 1, 2], [0], [0]>} : vector<2x1x12xf32>, vector<2x12x32xf32>, vector<2x1x32xf32> -> vector<2x1x32xf32>
    "tpu.trace_stop"() : () -> ()
    %31 = vector.shape_cast %30 : vector<2x1x32xf32> to vector<2x32xf32>
    %c0_20 = arith.constant 0 : index
    %c0_21 = arith.constant 0 : index
    %32 = vector.load %arg6[%c0_20, %c0_21] : memref<64x32xf32, #tpu.memory_space<vmem>>, vector<32x32xf32>
    %cst_22 = arith.constant dense<0.000000e+00> : vector<2x32xf32>
    %33 = tpu.matmul %9, %32, %cst_22 {dimension_numbers = #tpu.dot_dimension_numbers<[1], [0], [0], [1], [0, 0, 1, 1], [], []>} : vector<2x32xf32>, vector<32x32xf32>, vector<2x32xf32> -> vector<2x32xf32>
    %c32_23 = arith.constant 32 : index
    %c0_24 = arith.constant 0 : index
    %34 = vector.load %arg6[%c32_23, %c0_24] : memref<64x32xf32, #tpu.memory_space<vmem>>, vector<32x32xf32>
    %cst_25 = arith.constant dense<0.000000e+00> : vector<2x32xf32>
    %35 = tpu.matmul %31, %34, %cst_25 {dimension_numbers = #tpu.dot_dimension_numbers<[1], [0], [0], [1], [0, 0, 1, 1], [], []>} : vector<2x32xf32>, vector<32x32xf32>, vector<2x32xf32> -> vector<2x32xf32>
    %36 = arith.addf %33, %35 : vector<2x32xf32>
    %c0_26 = arith.constant 0 : index
    %c0_27 = arith.constant 0 : index
    %37 = vector.load %arg7[%c0_26, %c0_27] : memref<1x32xf32, #tpu.memory_space<vmem>>, vector<1x32xf32>
    %38 = vector.broadcast %37 : vector<1x32xf32> to vector<2x32xf32>
    %39 = arith.addf %36, %38 : vector<2x32xf32>
    %cst_28 = arith.constant 0.000000e+00 : f32
    %40 = vector.broadcast %cst_28 : f32 to vector<2x32xf32>
    %41 = arith.maximumf %39, %40 : vector<2x32xf32>
    %c0_29 = arith.constant 0 : index
    %c0_30 = arith.constant 0 : index
    %42 = vector.load %arg8[%c0_29, %c0_30] : memref<32x96xf32, #tpu.memory_space<vmem>>, vector<32x96xf32>
    %cst_31 = arith.constant dense<0.000000e+00> : vector<2x96xf32>
    %43 = tpu.matmul %41, %42, %cst_31 {dimension_numbers = #tpu.dot_dimension_numbers<[1], [0], [0], [1], [0, 0, 1, 1], [], []>} : vector<2x32xf32>, vector<32x96xf32>, vector<2x96xf32> -> vector<2x96xf32>
    %c0_32 = arith.constant 0 : index
    %c0_33 = arith.constant 0 : index
    %44 = vector.load %arg9[%c0_32, %c0_33] : memref<1x96xf32, #tpu.memory_space<vmem>>, vector<1x96xf32>
    %45 = vector.broadcast %44 : vector<1x96xf32> to vector<2x96xf32>
    %46 = arith.addf %43, %45 : vector<2x96xf32>
    %c0_34 = arith.constant 0 : index
    %c0_35 = arith.constant 0 : index
    %47 = vector.load %arg10[%c0_34, %c0_35] : memref<32x96xf32, #tpu.memory_space<vmem>>, vector<32x96xf32>
    %cst_36 = arith.constant dense<0.000000e+00> : vector<2x96xf32>
    %48 = tpu.matmul %0, %47, %cst_36 {dimension_numbers = #tpu.dot_dimension_numbers<[1], [0], [0], [1], [0, 0, 1, 1], [], []>} : vector<2x32xf32>, vector<32x96xf32>, vector<2x96xf32> -> vector<2x96xf32>
    %c0_37 = arith.constant 0 : index
    %c0_38 = arith.constant 0 : index
    %49 = vector.load %arg11[%c0_37, %c0_38] : memref<1x96xf32, #tpu.memory_space<vmem>>, vector<1x96xf32>
    %50 = vector.broadcast %49 : vector<1x96xf32> to vector<2x96xf32>
    %51 = arith.addf %48, %50 : vector<2x96xf32>
    %52 = arith.addf %46, %51 : vector<2x96xf32>
    %53 = vector.extract_strided_slice %52 {offsets = [0, 0], sizes = [2, 32], strides = [1, 1]} : vector<2x96xf32> to vector<2x32xf32>
    %cst_39 = arith.constant 0.000000e+00 : f32
    %54 = vector.broadcast %cst_39 : f32 to vector<2x32xf32>
    %55 = arith.subf %54, %53 : vector<2x32xf32>
    %56 = math.exp %55 : vector<2x32xf32>
    %cst_40 = arith.constant 1.000000e+00 : f32
    %57 = vector.broadcast %cst_40 : f32 to vector<2x32xf32>
    %58 = arith.addf %57, %56 : vector<2x32xf32>
    %59 = tpu.reciprocal %58 {approx = true} : vector<2x32xf32> -> vector<2x32xf32>
    %60 = vector.extract_strided_slice %52 {offsets = [0, 32], sizes = [2, 32], strides = [1, 1]} : vector<2x96xf32> to vector<2x32xf32>
    %cst_41 = arith.constant 0.000000e+00 : f32
    %61 = vector.broadcast %cst_41 : f32 to vector<2x32xf32>
    %62 = arith.subf %61, %60 : vector<2x32xf32>
    %63 = math.exp %62 : vector<2x32xf32>
    %cst_42 = arith.constant 1.000000e+00 : f32
    %64 = vector.broadcast %cst_42 : f32 to vector<2x32xf32>
    %65 = arith.addf %64, %63 : vector<2x32xf32>
    %66 = tpu.reciprocal %65 {approx = true} : vector<2x32xf32> -> vector<2x32xf32>
    %67 = vector.extract_strided_slice %46 {offsets = [0, 64], sizes = [2, 32], strides = [1, 1]} : vector<2x96xf32> to vector<2x32xf32>
    %68 = vector.extract_strided_slice %51 {offsets = [0, 64], sizes = [2, 32], strides = [1, 1]} : vector<2x96xf32> to vector<2x32xf32>
    %69 = arith.mulf %59, %68 : vector<2x32xf32>
    %70 = arith.addf %67, %69 : vector<2x32xf32>
    %71 = math.tanh %70 : vector<2x32xf32>
    %cst_43 = arith.constant 1.000000e+00 : f32
    %72 = vector.broadcast %cst_43 : f32 to vector<2x32xf32>
    %73 = arith.subf %72, %66 : vector<2x32xf32>
    %74 = arith.mulf %73, %71 : vector<2x32xf32>
    %75 = arith.mulf %66, %0 : vector<2x32xf32>
    %76 = arith.addf %74, %75 : vector<2x32xf32>
    %c0_44 = arith.constant 0 : index
    %c0_45 = arith.constant 0 : index
    %77 = vector.load %arg21[%c0_44, %c0_45] : memref<2x32xf32, #tpu.memory_space<vmem>>, vector<2x32xf32>
    tpu.vector_store %arg21[%c0_44, %c0_45], %76 {strides = array<i32>} : memref<2x32xf32, #tpu.memory_space<vmem>>, vector<2x32xf32>,
    %c0_46 = arith.constant 0 : index
    %c0_47 = arith.constant 0 : index
    %78 = vector.load %arg12[%c0_46, %c0_47] : memref<32x32xf32, #tpu.memory_space<vmem>>, vector<32x32xf32>
    %cst_48 = arith.constant dense<0.000000e+00> : vector<2x32xf32>
    %79 = tpu.matmul %76, %78, %cst_48 {dimension_numbers = #tpu.dot_dimension_numbers<[1], [0], [0], [1], [0, 0, 1, 1], [], []>} : vector<2x32xf32>, vector<32x32xf32>, vector<2x32xf32> -> vector<2x32xf32>
    %c0_49 = arith.constant 0 : index
    %c0_50 = arith.constant 0 : index
    %80 = vector.load %arg13[%c0_49, %c0_50] : memref<1x32xf32, #tpu.memory_space<vmem>>, vector<1x32xf32>
    %81 = vector.broadcast %80 : vector<1x32xf32> to vector<2x32xf32>
    %82 = arith.addf %79, %81 : vector<2x32xf32>
    %83 = math.tanh %82 : vector<2x32xf32>
    %c0_51 = arith.constant 0 : index
    %c0_52 = arith.constant 0 : index
    %84 = vector.load %arg14[%c0_51, %c0_52] : memref<32x32xf32, #tpu.memory_space<vmem>>, vector<32x32xf32>
    %cst_53 = arith.constant dense<0.000000e+00> : vector<2x32xf32>
    %85 = tpu.matmul %83, %84, %cst_53 {dimension_numbers = #tpu.dot_dimension_numbers<[1], [0], [0], [1], [0, 0, 1, 1], [], []>} : vector<2x32xf32>, vector<32x32xf32>, vector<2x32xf32> -> vector<2x32xf32>
    %c0_54 = arith.constant 0 : index
    %c0_55 = arith.constant 0 : index
    %86 = vector.load %arg15[%c0_54, %c0_55] : memref<1x32xf32, #tpu.memory_space<vmem>>, vector<1x32xf32>
    %87 = vector.broadcast %86 : vector<1x32xf32> to vector<2x32xf32>
    %88 = arith.addf %85, %87 : vector<2x32xf32>
    %89 = math.tanh %88 : vector<2x32xf32>
    %c0_56 = arith.constant 0 : index
    %c0_57 = arith.constant 0 : index
    %90 = vector.load %arg16[%c0_56, %c0_57] : memref<32x32xf32, #tpu.memory_space<vmem>>, vector<32x32xf32>
    %cst_58 = arith.constant dense<0.000000e+00> : vector<2x32xf32>
    %91 = tpu.matmul %89, %90, %cst_58 {dimension_numbers = #tpu.dot_dimension_numbers<[1], [0], [0], [1], [0, 0, 1, 1], [], []>} : vector<2x32xf32>, vector<32x32xf32>, vector<2x32xf32> -> vector<2x32xf32>
    %c0_59 = arith.constant 0 : index
    %c0_60 = arith.constant 0 : index
    %92 = vector.load %arg17[%c0_59, %c0_60] : memref<1x32xf32, #tpu.memory_space<vmem>>, vector<1x32xf32>
    %93 = vector.broadcast %92 : vector<1x32xf32> to vector<2x32xf32>
    %94 = arith.addf %91, %93 : vector<2x32xf32>
    %95 = math.tanh %94 : vector<2x32xf32>
    %c0_61 = arith.constant 0 : index
    %c0_62 = arith.constant 0 : index
    %96 = vector.load %arg18[%c0_61, %c0_62] : memref<32x16xf32, #tpu.memory_space<vmem>>, vector<32x16xf32>
    %cst_63 = arith.constant dense<0.000000e+00> : vector<2x16xf32>
    %97 = tpu.matmul %95, %96, %cst_63 {dimension_numbers = #tpu.dot_dimension_numbers<[1], [0], [0], [1], [0, 0, 1, 1], [], []>} : vector<2x32xf32>, vector<32x16xf32>, vector<2x16xf32> -> vector<2x16xf32>
    %c0_64 = arith.constant 0 : index
    %c0_65 = arith.constant 0 : index
    %98 = vector.load %arg19[%c0_64, %c0_65] : memref<1x16xf32, #tpu.memory_space<vmem>>, vector<1x16xf32>
    %99 = vector.broadcast %98 : vector<1x16xf32> to vector<2x16xf32>
    %100 = arith.addf %97, %99 : vector<2x16xf32>
    %c0_66 = arith.constant 0 : index
    %c0_67 = arith.constant 0 : index
    %101 = vector.load %arg20[%c0_66, %c0_67] : memref<2x16xf32, #tpu.memory_space<vmem>>, vector<2x16xf32>
    tpu.vector_store %arg20[%c0_66, %c0_67], %100 {strides = array<i32>} : memref<2x16xf32, #tpu.memory_space<vmem>>, vector<2x16xf32>,
    return
  }
}

</mosaic_0001>

<llo_original>
// kernel: tpu_custom_call.1
$region0: #{tpu_custom_call.1}
  #allocation0 [shape = 'u32[]', space=smem, size = 0x4, offset = 0x4, fixed_abs, tag = 'smem constant byte address 0x4 - core index']
  #allocation1 [shape = 'u32[72,128]{1,0:T(1,128)}', space=vmem, size = 0x9000, scoped, tag = 'internal scratch']
  %s0 = inlined_call_operand.vmem [shape: s32[2,1], index: 0, kind: input, shape index: {}]
  %s1 = inlined_call_operand.vmem [shape: f32[2,32], index: 1, kind: input, shape index: {}]
  %s2 = inlined_call_operand.vmem [shape: f32[2,12,32], index: 2, kind: input, shape index: {}]
  %s3 = inlined_call_operand.vmem [shape: f32[16,32], index: 3, kind: input, shape index: {}]
  %s4 = inlined_call_operand.vmem [shape: f32[64,12], index: 4, kind: input, shape index: {}]
  %s5 = inlined_call_operand.vmem [shape: f32[1,12], index: 5, kind: input, shape index: {}]
  %s6 = inlined_call_operand.vmem [shape: f32[64,32], index: 6, kind: input, shape index: {}]
  %s7 = inlined_call_operand.vmem [shape: f32[1,32], index: 7, kind: input, shape index: {}]
  %s8 = inlined_call_operand.vmem [shape: f32[32,96], index: 8, kind: input, shape index: {}]
  %s9 = inlined_call_operand.vmem [shape: f32[1,96], index: 9, kind: input, shape index: {}]
  %s10 = inlined_call_operand.vmem [shape: f32[32,96], index: 10, kind: input, shape index: {}]
  %s11 = inlined_call_operand.vmem [shape: f32[1,96], index: 11, kind: input, shape index: {}]
  %s12 = inlined_call_operand.vmem [shape: f32[32,32], index: 12, kind: input, shape index: {}]
  %s13 = inlined_call_operand.vmem [shape: f32[1,32], index: 13, kind: input, shape index: {}]
  %s14 = inlined_call_operand.vmem [shape: f32[32,32], index: 14, kind: input, shape index: {}]
  %s15 = inlined_call_operand.vmem [shape: f32[1,32], index: 15, kind: input, shape index: {}]
  %s16 = inlined_call_operand.vmem [shape: f32[32,32], index: 16, kind: input, shape index: {}]
  %s17 = inlined_call_operand.vmem [shape: f32[1,32], index: 17, kind: input, shape index: {}]
  %s18 = inlined_call_operand.vmem [shape: f32[32,16], index: 18, kind: input, shape index: {}]
  %s19 = inlined_call_operand.vmem [shape: f32[1,16], index: 19, kind: input, shape index: {}]
  %s20 = inlined_call_operand.hbm [shape: f32[2,16], index: 20, kind: output, shape index: {0}]
  %s21 = inlined_call_operand.hbm [shape: f32[2,32], index: 21, kind: output, shape index: {1}]
  %s22 = inlined_call_operand.hbm [shape: f32[2,12], index: 22, kind: output, shape index: {2}]
  %23 = xla_tuple %s20, %s21, %s22
  %s24 = sld [smem:[#allocation0]]
  $region106: #{tpu_custom_call.1} parent=0
    _
  %s26 = ssub.s32 1, %s24
  %s27 = scalar_select 0, %s26, %s24
  $region1: #{tpu_custom_call.1} parent=0
    #allocation2 [shape = 'u8[1024]{0}', space=vmem, size = 0x400, scoped, tag = 'output window, operand 0, single buffered']
    #allocation3 [shape = 's32[1]{0}', space=sflag, size = 0x4, scoped, tag = 'scoped memory for tpu_custom_call.1']
    #allocation4 [shape = 'u8[1024]{0}', space=vmem, size = 0x400, scoped, tag = 'output window, operand 1, single buffered']
    #allocation5 [shape = 's32[1]{0}', space=sflag, size = 0x4, scoped, tag = 'scoped memory for tpu_custom_call.1']
    #allocation6 [shape = 'u8[1024]{0}', space=vmem, size = 0x400, scoped, tag = 'output window, operand 2, single buffered']
    %28 = vsyncpa [#allocation3], 0
    %29 = vsyncpa [#allocation5], 0
    // Predicated region
    $region2: #{tpu_custom_call.1} parent=1 // pred_check
      _
    $region3: #{tpu_custom_call.1} parent=1 // pred_check_branch
      %31 = sbr.rel (0) target = $region5
    $region4: #{tpu_custom_call.1} parent=1 // pred_region
      _
    $region5: #{tpu_custom_call.1} parent=1 // pred_fallthru
      _
    // Predicated region
    $region6: #{tpu_custom_call.1} parent=1 // pred_check
      _
    $region7: #{tpu_custom_call.1} parent=1 // pred_check_branch
      %33 = sbr.rel (0) target = $region9
    $region8: #{tpu_custom_call.1} parent=1 // pred_region
      _
    $region9: #{tpu_custom_call.1} parent=1 // pred_fallthru
      _
    // Predicated region
    $region10: #{tpu_custom_call.1} parent=1 // pred_check
      _
    $region11: #{tpu_custom_call.1} parent=1 // pred_check_branch
      %35 = sbr.rel (0) target = $region13
    $region12: #{tpu_custom_call.1} parent=1 // pred_region
      _
    $region13: #{tpu_custom_call.1} parent=1 // pred_fallthru
      _
    // Predicated region
    $region14: #{tpu_custom_call.1} parent=1 // pred_check
      _
    $region15: #{tpu_custom_call.1} parent=1 // pred_check_branch
      %37 = sbr.rel (0) target = $region17
    $region16: #{tpu_custom_call.1} parent=1 // pred_region
      _
    $region17: #{tpu_custom_call.1} parent=1 // pred_fallthru
      _
    // Predicated region
    $region18: #{tpu_custom_call.1} parent=1 // pred_check
      _
    $region19: #{tpu_custom_call.1} parent=1 // pred_check_branch
      %39 = sbr.rel (0) target = $region21
    $region20: #{tpu_custom_call.1} parent=1 // pred_region
      _
    $region21: #{tpu_custom_call.1} parent=1 // pred_fallthru
      _
    // Predicated region
    $region22: #{tpu_custom_call.1} parent=1 // pred_check
      _
    $region23: #{tpu_custom_call.1} parent=1 // pred_check_branch
      %41 = sbr.rel (0) target = $region25
    $region24: #{tpu_custom_call.1} parent=1 // pred_region
      _
    $region25: #{tpu_custom_call.1} parent=1 // pred_fallthru
      _
    // Predicated region
    $region26: #{tpu_custom_call.1} parent=1 // pred_check
      _
    $region27: #{tpu_custom_call.1} parent=1 // pred_check_branch
      %43 = sbr.rel (0) target = $region29
    $region28: #{tpu_custom_call.1} parent=1 // pred_region
      _
    $region29: #{tpu_custom_call.1} parent=1 // pred_fallthru
      _
    // Predicated region
    $region30: #{tpu_custom_call.1} parent=1 // pred_check
      _
    $region31: #{tpu_custom_call.1} parent=1 // pred_check_branch
      %45 = sbr.rel (0) target = $region33
    $region32: #{tpu_custom_call.1} parent=1 // pred_region
      _
    $region33: #{tpu_custom_call.1} parent=1 // pred_fallthru
      _
    // Predicated region
    $region34: #{tpu_custom_call.1} parent=1 // pred_check
      _
    $region35: #{tpu_custom_call.1} parent=1 // pred_check_branch
      %47 = sbr.rel (0) target = $region37
    $region36: #{tpu_custom_call.1} parent=1 // pred_region
      _
    $region37: #{tpu_custom_call.1} parent=1 // pred_fallthru
      _
    // Predicated region
    $region38: #{tpu_custom_call.1} parent=1 // pred_check
      _
    $region39: #{tpu_custom_call.1} parent=1 // pred_check_branch
      %49 = sbr.rel (0) target = $region41
    $region40: #{tpu_custom_call.1} parent=1 // pred_region
      _
    $region41: #{tpu_custom_call.1} parent=1 // pred_fallthru
      _
    // Predicated region
    $region42: #{tpu_custom_call.1} parent=1 // pred_check
      _
    $region43: #{tpu_custom_call.1} parent=1 // pred_check_branch
      %51 = sbr.rel (0) target = $region45
    $region44: #{tpu_custom_call.1} parent=1 // pred_region
      _
    $region45: #{tpu_custom_call.1} parent=1 // pred_fallthru
      _
    // Predicated region
    $region46: #{tpu_custom_call.1} parent=1 // pred_check
      _
    $region47: #{tpu_custom_call.1} parent=1 // pred_check_branch
      %53 = sbr.rel (0) target = $region49
    $region48: #{tpu_custom_call.1} parent=1 // pred_region
      _
    $region49: #{tpu_custom_call.1} parent=1 // pred_fallthru
      _
    // Predicated region
    $region50: #{tpu_custom_call.1} parent=1 // pred_check
      _
    $region51: #{tpu_custom_call.1} parent=1 // pred_check_branch
      %55 = sbr.rel (0) target = $region53
    $region52: #{tpu_custom_call.1} parent=1 // pred_region
      _
    $region53: #{tpu_custom_call.1} parent=1 // pred_fallthru
      _
    // Predicated region
    $region54: #{tpu_custom_call.1} parent=1 // pred_check
      _
    $region55: #{tpu_custom_call.1} parent=1 // pred_check_branch
      %57 = sbr.rel (0) target = $region57
    $region56: #{tpu_custom_call.1} parent=1 // pred_region
      _
    $region57: #{tpu_custom_call.1} parent=1 // pred_fallthru
      _
    // Predicated region
    $region58: #{tpu_custom_call.1} parent=1 // pred_check
      _
    $region59: #{tpu_custom_call.1} parent=1 // pred_check_branch
      %59 = sbr.rel (0) target = $region61
    $region60: #{tpu_custom_call.1} parent=1 // pred_region
      _
    $region61: #{tpu_custom_call.1} parent=1 // pred_fallthru
      _
    // Predicated region
    $region62: #{tpu_custom_call.1} parent=1 // pred_check
      _
    $region63: #{tpu_custom_call.1} parent=1 // pred_check_branch
      %61 = sbr.rel (0) target = $region65
    $region64: #{tpu_custom_call.1} parent=1 // pred_region
      _
    $region65: #{tpu_custom_call.1} parent=1 // pred_fallthru
      _
    // Predicated region
    $region66: #{tpu_custom_call.1} parent=1 // pred_check
      _
    $region67: #{tpu_custom_call.1} parent=1 // pred_check_branch
      %63 = sbr.rel (0) target = $region69
    $region68: #{tpu_custom_call.1} parent=1 // pred_region
      _
    $region69: #{tpu_custom_call.1} parent=1 // pred_fallthru
      _
    // Predicated region
    $region70: #{tpu_custom_call.1} parent=1 // pred_check
      _
    $region71: #{tpu_custom_call.1} parent=1 // pred_check_branch
      %65 = sbr.rel (0) target = $region73
    $region72: #{tpu_custom_call.1} parent=1 // pred_region
      _
    $region73: #{tpu_custom_call.1} parent=1 // pred_fallthru
      _
    // Predicated region
    $region74: #{tpu_custom_call.1} parent=1 // pred_check
      _
    $region75: #{tpu_custom_call.1} parent=1 // pred_check_branch
      %67 = sbr.rel (0) target = $region77
    $region76: #{tpu_custom_call.1} parent=1 // pred_region
      _
    $region77: #{tpu_custom_call.1} parent=1 // pred_fallthru
      _
    // Predicated region
    $region78: #{tpu_custom_call.1} parent=1 // pred_check
      _
    $region79: #{tpu_custom_call.1} parent=1 // pred_check_branch
      %69 = sbr.rel (0) target = $region81
    $region80: #{tpu_custom_call.1} parent=1 // pred_region
      _
    $region81: #{tpu_custom_call.1} parent=1 // pred_fallthru
      _
    %v70 = vld [vmem:[%s1] sm:$0x3]
    %v71 = vld [vmem:[%s2] sm:$0xff]
    %v72 = vld [vmem:[%s2 + $0x8] sm:$0xf]
    %v73 = vld [vmem:[%s2 + $0x10] sm:$0xff]
    %v74 = vld [vmem:[%s2 + $0x18] sm:$0xf]
    %v75 = vld [vmem:[%s0] sm:$0x3]
    %v76 = vlaneseq
    %v77 = vand.u32 %v76, 127
    %78 = vset.pattern.permute.xlu0 0
    %79 = vperm.xlu0 %78, %v75
    %v80 = vpop.permute.xlu0 %79
    %vm81 = vcmp.eq.s32.totalorder %v77, %v80
    %v82 = vsel %vm81, 1, 0
    %v83 = vcvt.s32.f32 %v82
    %v84 = vld [vmem:[%s3] sm:$0xff]
    %v85 = vld [vmem:[%s3 + $0x8] sm:$0xff]
    %vm86 = vcmask 130048
    %v88 = vsel %vm86, %v83, 0
    %90 = vmatpush.msra.mxu0 0.0
    %91 = vmatpush.msra.mxu0 0.0
    %92 = vmatpush.msra.mxu0 0.0
    %93 = vmatpush.msra.mxu0 0.0
    %94 = vmatpush.msra.mxu0 0.0
    %95 = vmatpush.msra.mxu0 0.0
    %96 = vmatpush.msra.mxu0 0.0
    %97 = vmatpush.msra.mxu0 0.0
    %98 = vmatpush.msra.mxu0 0.0
    %99 = vmatpush.msra.mxu0 0.0
    %100 = vmatpush.msra.mxu0 0.0
    %101 = vmatpush.msra.mxu0 0.0
    %102 = vmatpush.msra.mxu0 0.0
    %103 = vmatpush.msra.mxu0 0.0
    %104 = vmatpush.msra.mxu0 %v85
    %105 = vmatpush.msra.mxu0 %v84
    %106 = vmatmul.f32.gmra.mxu0 %v88
    %v107 = vpop.f32.mrf.mxu0
    %v108 = vadd.f32 0.0, %v107
    %109 = vdwg.mxu0
    %v110 = vld [vmem:[%s4] sm:$0xff]
    %v111 = vld [vmem:[%s4 + $0x8] sm:$0xff]
    %v112 = vld [vmem:[%s4 + $0x10] sm:$0xff]
    %v113 = vld [vmem:[%s4 + $0x18] sm:$0xff]
    %v114 = vld [vmem:[%s4 + $0x20] sm:$0xff]
    %v115 = vld [vmem:[%s4 + $0x28] sm:$0xff]
    %v116 = vld [vmem:[%s4 + $0x30] sm:$0xff]
    %v117 = vld [vmem:[%s4 + $0x38] sm:$0xff]
    %vm118 = vcmask 261120
    %v120 = vsel %vm118, %v70, 0
    %122 = vmatpush.msra.mxu0 0.0
    %123 = vmatpush.msra.mxu0 0.0
    %124 = vmatpush.msra.mxu0 0.0
    %125 = vmatpush.msra.mxu0 0.0
    %126 = vmatpush.msra.mxu0 0.0
    %127 = vmatpush.msra.mxu0 0.0
    %128 = vmatpush.msra.mxu0 0.0
    %129 = vmatpush.msra.mxu0 0.0
    %130 = vmatpush.msra.mxu0 0.0
    %131 = vmatpush.msra.mxu0 0.0
    %132 = vmatpush.msra.mxu0 0.0
    %133 = vmatpush.msra.mxu0 0.0
    %134 = vmatpush.msra.mxu0 %v117
    %135 = vmatpush.msra.mxu0 %v116
    %136 = vmatpush.msra.mxu0 %v115
    %137 = vmatpush.msra.mxu0 %v114
    %138 = vmatmul.f32.gmra.mxu0 %v120
    %v139 = vpop.f32.mrf.mxu0
    %v140 = vadd.f32 0.0, %v139
    %141 = vdwg.mxu0
    %v143 = vsel %vm118, %v108, 0
    %145 = vmatpush.msra.mxu0 0.0
    %146 = vmatpush.msra.mxu0 0.0
    %147 = vmatpush.msra.mxu0 0.0
    %148 = vmatpush.msra.mxu0 0.0
    %149 = vmatpush.msra.mxu0 0.0
    %150 = vmatpush.msra.mxu0 0.0
    %151 = vmatpush.msra.mxu0 0.0
    %152 = vmatpush.msra.mxu0 0.0
    %153 = vmatpush.msra.mxu0 0.0
    %154 = vmatpush.msra.mxu0 0.0
    %155 = vmatpush.msra.mxu0 0.0
    %156 = vmatpush.msra.mxu0 0.0
    %157 = vmatpush.msra.mxu0 %v113
    %158 = vmatpush.msra.mxu0 %v112
    %159 = vmatpush.msra.mxu0 %v111
    %160 = vmatpush.msra.mxu0 %v110
    %161 = vmatmul.f32.gmra.mxu0 %v143
    %v162 = vpop.f32.mrf.mxu0
    %v163 = vadd.f32 %v140, %v162
    %164 = vdwg.mxu0
    %v165 = vld [vmem:[%s5] sm:$0x1]
    %v167 = vperm.slane %v165, 0
    %v169 = vadd.f32 %v163, %v167
    %vm170 = vcmask 91136
    %v171 = vsel %vm170, %v169, -inf
    %172 = vmax.xlane.f32.xlu0 %v171
    %v173 = vpop.xlane.xlu0 %172
    %v174 = vsub.f32 %v169, %v173
    %v175 = vmul.f32 %v174, 1.442695
    %v176 = vpow.pop %v175
    %v177 = vsel %vm170, %v176, 0.0
    %178 = vadd.xlane.f32.xlu0 %v177
    %v179 = vpop.xlane.xlu0 %178
    %v180 = vrcp.pop %v179
    %v181 = vmul.f32 %v176, %v180
    %182 = vst.msk [vmem:[#allocation6] sm:$0x3] %vm170, %v181
    %v184 = vrot.slane %v181, 1
    %vm185 = vcmask 97280
    %v186 = vsel %vm185, %v181, 0
    %vm188 = vcmask 1043456
    %v190 = vsel %vm188, %v72, 0
    %192 = vmatpush.msra.mxu0 0.0
    %193 = vmatpush.msra.mxu0 0.0
    %194 = vmatpush.msra.mxu0 0.0
    %195 = vmatpush.msra.mxu0 0.0
    %196 = vmatpush.msra.mxu0 0.0
    %197 = vmatpush.msra.mxu0 0.0
    %198 = vmatpush.msra.mxu0 0.0
    %199 = vmatpush.msra.mxu0 0.0
    %200 = vmatpush.msra.mxu0 0.0
    %201 = vmatpush.msra.mxu0 0.0
    %202 = vmatpush.msra.mxu0 0.0
    %203 = vmatpush.msra.mxu0 0.0
    %204 = vmatpush.msra.mxu0 0.0
    %205 = vmatpush.msra.mxu0 0.0
    %206 = vmatpush.msra.mxu0 %v190
    %207 = vmatpush.msra.mxu0 %v71
    %208 = vmatmul.f32.gmra.mxu0 %v186
    %v209 = vpop.f32.mrf.mxu0
    %v210 = vadd.f32 0.0, %v209
    %211 = vdwg.mxu0
    %v212 = vsel %vm185, %v184, 0
    %v215 = vsel %vm188, %v74, 0
    %217 = vmatpush.msra.mxu0 0.0
    %218 = vmatpush.msra.mxu0 0.0
    %219 = vmatpush.msra.mxu0 0.0
    %220 = vmatpush.msra.mxu0 0.0
    %221 = vmatpush.msra.mxu0 0.0
    %222 = vmatpush.msra.mxu0 0.0
    %223 = vmatpush.msra.mxu0 0.0
    %224 = vmatpush.msra.mxu0 0.0
    %225 = vmatpush.msra.mxu0 0.0
    %226 = vmatpush.msra.mxu0 0.0
    %227 = vmatpush.msra.mxu0 0.0
    %228 = vmatpush.msra.mxu0 0.0
    %229 = vmatpush.msra.mxu0 0.0
    %230 = vmatpush.msra.mxu0 0.0
    %231 = vmatpush.msra.mxu0 %v215
    %232 = vmatpush.msra.mxu0 %v73
    %233 = vmatmul.f32.gmra.mxu0 %v212
    %v234 = vpop.f32.mrf.mxu0
    %v235 = vadd.f32 0.0, %v234
    %236 = vdwg.mxu0
    %v237 = vld [vmem:[%s6] sm:$0xff]
    %v238 = vld [vmem:[%s6 + $0x8] sm:$0xff]
    %v239 = vld [vmem:[%s6 + $0x10] sm:$0xff]
    %v240 = vld [vmem:[%s6 + $0x18] sm:$0xff]
    %v241 = vld [vmem:[%s6 + $0x20] sm:$0xff]
    %v242 = vld [vmem:[%s6 + $0x28] sm:$0xff]
    %v243 = vld [vmem:[%s6 + $0x30] sm:$0xff]
    %v244 = vld [vmem:[%s6 + $0x38] sm:$0xff]
    %v247 = vrot.slane %v235, 7
    %vm248 = vcmask 1041409
    %v249 = vsel %vm248, %v247, %v210
    %v250 = vsel %vm118, %v249, 0
    %252 = vmatpush.msra.mxu0 0.0
    %253 = vmatpush.msra.mxu0 0.0
    %254 = vmatpush.msra.mxu0 0.0
    %255 = vmatpush.msra.mxu0 0.0
    %256 = vmatpush.msra.mxu0 0.0
    %257 = vmatpush.msra.mxu0 0.0
    %258 = vmatpush.msra.mxu0 0.0
    %259 = vmatpush.msra.mxu0 0.0
    %260 = vmatpush.msra.mxu0 0.0
    %261 = vmatpush.msra.mxu0 0.0
    %262 = vmatpush.msra.mxu0 0.0
    %263 = vmatpush.msra.mxu0 0.0
    %264 = vmatpush.msra.mxu0 %v244
    %265 = vmatpush.msra.mxu0 %v243
    %266 = vmatpush.msra.mxu0 %v242
    %267 = vmatpush.msra.mxu0 %v241
    %268 = vmatmul.f32.gmra.mxu0 %v250
    %v269 = vpop.f32.mrf.mxu0
    %v270 = vadd.f32 0.0, %v269
    %271 = vdwg.mxu0
    %272 = vmatpush.msra.mxu0 0.0
    %273 = vmatpush.msra.mxu0 0.0
    %274 = vmatpush.msra.mxu0 0.0
    %275 = vmatpush.msra.mxu0 0.0
    %276 = vmatpush.msra.mxu0 0.0
    %277 = vmatpush.msra.mxu0 0.0
    %278 = vmatpush.msra.mxu0 0.0
    %279 = vmatpush.msra.mxu0 0.0
    %280 = vmatpush.msra.mxu0 0.0
    %281 = vmatpush.msra.mxu0 0.0
    %282 = vmatpush.msra.mxu0 0.0
    %283 = vmatpush.msra.mxu0 0.0
    %284 = vmatpush.msra.mxu0 %v240
    %285 = vmatpush.msra.mxu0 %v239
    %286 = vmatpush.msra.mxu0 %v238
    %287 = vmatpush.msra.mxu0 %v237
    %288 = vmatmul.f32.gmra.mxu0 %v143
    %v289 = vpop.f32.mrf.mxu0
    %v290 = vadd.f32 %v270, %v289
    %291 = vdwg.mxu0
    %v292 = vld [vmem:[%s7] sm:$0x1]
    %v294 = vperm.slane %v292, 0
    %v296 = vadd.f32 %v290, %v294
    %v297 = vmax.f32 %v296, 0.0
    %v298 = vld [vmem:[%s8] sm:$0xff]
    %v299 = vld [vmem:[%s8 + $0x8] sm:$0xff]
    %v300 = vld [vmem:[%s8 + $0x10] sm:$0xff]
    %v301 = vld [vmem:[%s8 + $0x18] sm:$0xff]
    %v302 = vld [vmem:[%s9] sm:$0x1]
    %v304 = vperm.slane %v302, 0
    %v307 = vsel %vm118, %v297, 0
    %309 = vmatpush.msra.mxu0 0.0
    %310 = vmatpush.msra.mxu0 0.0
    %311 = vmatpush.msra.mxu0 0.0
    %312 = vmatpush.msra.mxu0 0.0
    %313 = vmatpush.msra.mxu0 0.0
    %314 = vmatpush.msra.mxu0 0.0
    %315 = vmatpush.msra.mxu0 0.0
    %316 = vmatpush.msra.mxu0 0.0
    %317 = vmatpush.msra.mxu0 0.0
    %318 = vmatpush.msra.mxu0 0.0
    %319 = vmatpush.msra.mxu0 0.0
    %320 = vmatpush.msra.mxu0 0.0
    %321 = vmatpush.msra.mxu0 %v301
    %322 = vmatpush.msra.mxu0 %v300
    %323 = vmatpush.msra.mxu0 %v299
    %324 = vmatpush.msra.mxu0 %v298
    %325 = vmatmul.f32.gmra.mxu0 %v307
    %v326 = vpop.f32.mrf.mxu0
    %v327 = vadd.f32 %v304, %v326
    %328 = vdwg.mxu0
    %v329 = vld [vmem:[%s10] sm:$0xff]
    %v330 = vld [vmem:[%s10 + $0x8] sm:$0xff]
    %v331 = vld [vmem:[%s10 + $0x10] sm:$0xff]
    %v332 = vld [vmem:[%s10 + $0x18] sm:$0xff]
    %v333 = vld [vmem:[%s11] sm:$0x1]
    %v335 = vperm.slane %v333, 0
    %337 = vmatpush.msra.mxu0 0.0
    %338 = vmatpush.msra.mxu0 0.0
    %339 = vmatpush.msra.mxu0 0.0
    %340 = vmatpush.msra.mxu0 0.0
    %341 = vmatpush.msra.mxu0 0.0
    %342 = vmatpush.msra.mxu0 0.0
    %343 = vmatpush.msra.mxu0 0.0
    %344 = vmatpush.msra.mxu0 0.0
    %345 = vmatpush.msra.mxu0 0.0
    %346 = vmatpush.msra.mxu0 0.0
    %347 = vmatpush.msra.mxu0 0.0
    %348 = vmatpush.msra.mxu0 0.0
    %349 = vmatpush.msra.mxu0 %v332
    %350 = vmatpush.msra.mxu0 %v331
    %351 = vmatpush.msra.mxu0 %v330
    %352 = vmatpush.msra.mxu0 %v329
    %353 = vmatmul.f32.gmra.mxu0 %v120
    %v354 = vpop.f32.mrf.mxu0
    %v355 = vadd.f32 %v335, %v354
    %356 = vdwg.mxu0
    %v357 = vadd.f32 %v327, %v355
    %v358 = vsub.f32 0.0, %v357
    %v359 = vmul.f32 %v358, 1.442695
    %v360 = vpow.pop %v359
    %v361 = vadd.f32 %v360, 1.0
    %v362 = vrcp.pop %v361
    %364 = vrot.lane.b32.xlu0 %v355, 64
    %v365 = vpop.permute.xlu0 %364
    %v367 = vmul.f32 %v362, %v365
    %369 = vrot.lane.b32.xlu0 %v367, 64
    %v370 = vpop.permute.xlu0 %369
    %v372 = vadd.f32 %v327, %v370
    %v373 = vtanh.pop %v372
    %v374 = vsub.f32 1.0, %v362
    %376 = vrot.lane.b32.xlu0 %v373, 96
    %v377 = vpop.permute.xlu0 %376
    %v379 = vmul.f32 %v374, %v377
    %380 = vrot.lane.b32.xlu0 %v70, 32
    %v381 = vpop.permute.xlu0 %380
    %v383 = vmul.f32 %v362, %v381
    %v384 = vadd.f32 %v379, %v383
    %386 = vrot.lane.b32.xlu0 %v384, 96
    %v387 = vpop.permute.xlu0 %386
    %vm389 = vcmask 254976
    %390 = vst.msk [vmem:[#allocation4] sm:$0x3] %vm389, %v387
    %v391 = vld [vmem:[%s12] sm:$0xff]
    %v392 = vld [vmem:[%s12 + $0x8] sm:$0xff]
    %v393 = vld [vmem:[%s12 + $0x10] sm:$0xff]
    %v394 = vld [vmem:[%s12 + $0x18] sm:$0xff]
    %v395 = vld [vmem:[%s13] sm:$0x1]
    %v397 = vperm.slane %v395, 0
    %v399 = vsel %vm118, %v387, 0
    %401 = vmatpush.msra.mxu0 0.0
    %402 = vmatpush.msra.mxu0 0.0
    %403 = vmatpush.msra.mxu0 0.0
    %404 = vmatpush.msra.mxu0 0.0
    %405 = vmatpush.msra.mxu0 0.0
    %406 = vmatpush.msra.mxu0 0.0
    %407 = vmatpush.msra.mxu0 0.0
    %408 = vmatpush.msra.mxu0 0.0
    %409 = vmatpush.msra.mxu0 0.0
    %410 = vmatpush.msra.mxu0 0.0
    %411 = vmatpush.msra.mxu0 0.0
    %412 = vmatpush.msra.mxu0 0.0
    %413 = vmatpush.msra.mxu0 %v394
    %414 = vmatpush.msra.mxu0 %v393
    %415 = vmatpush.msra.mxu0 %v392
    %416 = vmatpush.msra.mxu0 %v391
    %417 = vmatmul.f32.gmra.mxu0 %v399
    %v418 = vpop.f32.mrf.mxu0
    %v419 = vadd.f32 %v397, %v418
    %420 = vdwg.mxu0
    %v421 = vtanh.pop %v419
    %v422 = vld [vmem:[%s14] sm:$0xff]
    %v423 = vld [vmem:[%s14 + $0x8] sm:$0xff]
    %v424 = vld [vmem:[%s14 + $0x10] sm:$0xff]
    %v425 = vld [vmem:[%s14 + $0x18] sm:$0xff]
    %v426 = vld [vmem:[%s15] sm:$0x1]
    %v428 = vperm.slane %v426, 0
    %v431 = vsel %vm118, %v421, 0
    %433 = vmatpush.msra.mxu0 0.0
    %434 = vmatpush.msra.mxu0 0.0
    %435 = vmatpush.msra.mxu0 0.0
    %436 = vmatpush.msra.mxu0 0.0
    %437 = vmatpush.msra.mxu0 0.0
    %438 = vmatpush.msra.mxu0 0.0
    %439 = vmatpush.msra.mxu0 0.0
    %440 = vmatpush.msra.mxu0 0.0
    %441 = vmatpush.msra.mxu0 0.0
    %442 = vmatpush.msra.mxu0 0.0
    %443 = vmatpush.msra.mxu0 0.0
    %444 = vmatpush.msra.mxu0 0.0
    %445 = vmatpush.msra.mxu0 %v425
    %446 = vmatpush.msra.mxu0 %v424
    %447 = vmatpush.msra.mxu0 %v423
    %448 = vmatpush.msra.mxu0 %v422
    %449 = vmatmul.f32.gmra.mxu0 %v431
    %v450 = vpop.f32.mrf.mxu0
    %v451 = vadd.f32 %v428, %v450
    %452 = vdwg.mxu0
    %v453 = vtanh.pop %v451
    %v454 = vld [vmem:[%s16] sm:$0xff]
    %v455 = vld [vmem:[%s16 + $0x8] sm:$0xff]
    %v456 = vld [vmem:[%s16 + $0x10] sm:$0xff]
    %v457 = vld [vmem:[%s16 + $0x18] sm:$0xff]
    %v458 = vld [vmem:[%s17] sm:$0x1]
    %v460 = vperm.slane %v458, 0
    %v463 = vsel %vm118, %v453, 0
    %465 = vmatpush.msra.mxu0 0.0
    %466 = vmatpush.msra.mxu0 0.0
    %467 = vmatpush.msra.mxu0 0.0
    %468 = vmatpush.msra.mxu0 0.0
    %469 = vmatpush.msra.mxu0 0.0
    %470 = vmatpush.msra.mxu0 0.0
    %471 = vmatpush.msra.mxu0 0.0
    %472 = vmatpush.msra.mxu0 0.0
    %473 = vmatpush.msra.mxu0 0.0
    %474 = vmatpush.msra.mxu0 0.0
    %475 = vmatpush.msra.mxu0 0.0
    %476 = vmatpush.msra.mxu0 0.0
    %477 = vmatpush.msra.mxu0 %v457
    %478 = vmatpush.msra.mxu0 %v456
    %479 = vmatpush.msra.mxu0 %v455
    %480 = vmatpush.msra.mxu0 %v454
    %481 = vmatmul.f32.gmra.mxu0 %v463
    %v482 = vpop.f32.mrf.mxu0
    %v483 = vadd.f32 %v460, %v482
    %484 = vdwg.mxu0
    %v485 = vtanh.pop %v483
    %v486 = vld [vmem:[%s18] sm:$0xff]
    %v487 = vld [vmem:[%s18 + $0x8] sm:$0xff]
    %v488 = vld [vmem:[%s18 + $0x10] sm:$0xff]
    %v489 = vld [vmem:[%s18 + $0x18] sm:$0xff]
    %v490 = vld [vmem:[%s19] sm:$0x1]
    %v492 = vperm.slane %v490, 0
    %v495 = vsel %vm118, %v485, 0
    %497 = vmatpush.msra.mxu0 0.0
    %498 = vmatpush.msra.mxu0 0.0
    %499 = vmatpush.msra.mxu0 0.0
    %500 = vmatpush.msra.mxu0 0.0
    %501 = vmatpush.msra.mxu0 0.0
    %502 = vmatpush.msra.mxu0 0.0
    %503 = vmatpush.msra.mxu0 0.0
    %504 = vmatpush.msra.mxu0 0.0
    %505 = vmatpush.msra.mxu0 0.0
    %506 = vmatpush.msra.mxu0 0.0
    %507 = vmatpush.msra.mxu0 0.0
    %508 = vmatpush.msra.mxu0 0.0
    %509 = vmatpush.msra.mxu0 %v489
    %510 = vmatpush.msra.mxu0 %v488
    %511 = vmatpush.msra.mxu0 %v487
    %512 = vmatpush.msra.mxu0 %v486
    %513 = vmatmul.f32.gmra.mxu0 %v495
    %v514 = vpop.f32.mrf.mxu0
    %v515 = vadd.f32 %v492, %v514
    %516 = vdwg.mxu0
    %vm517 = vcmask 123904
    %518 = vst.msk [vmem:[#allocation2] sm:$0x3] %vm517, %v515
    // Predicated region
    $region82: #{tpu_custom_call.1} parent=1 // pred_check
      _
    $region83: #{tpu_custom_call.1} parent=1 // pred_check_branch
      %520 = sbr.rel (0) target = $region85
    $region84: #{tpu_custom_call.1} parent=1 // pred_region
      %522 = vsyncadd [#allocation3], 0
      %s524 = sshll.u32 [#allocation2], 4
      %s525 = int_to_ptr.vmem [resolvable:$true] %s524
      %s526 = sshll.u32 %s20, 4
      %s527 = int_to_ptr.hbm [resolvable:$true] %s526
      %529 = dma.vmem_to_hbm [thread:$0]  %s525, 32, %s527, [#allocation3]
    $region85: #{tpu_custom_call.1} parent=1 // pred_fallthru
      _
    // Predicated region
    $region86: #{tpu_custom_call.1} parent=1 // pred_check
      _
    $region87: #{tpu_custom_call.1} parent=1 // pred_check_branch
      %531 = sbr.rel (0) target = $region89
    $region88: #{tpu_custom_call.1} parent=1 // pred_region
      %533 = vsyncadd [#allocation5], 0
      %s535 = sshll.u32 [#allocation4], 4
      %s536 = int_to_ptr.vmem [resolvable:$true] %s535
      %s537 = sshll.u32 %s21, 4
      %s538 = int_to_ptr.hbm [resolvable:$true] %s537
      %540 = dma.vmem_to_hbm [thread:$0]  %s536, 32, %s538, [#allocation5]
    $region89: #{tpu_custom_call.1} parent=1 // pred_fallthru
      _
    // Predicated region
    $region90: #{tpu_custom_call.1} parent=1 // pred_check
      _
    $region91: #{tpu_custom_call.1} parent=1 // pred_check_branch
      %542 = sbr.rel (0) target = $region93
    $region92: #{tpu_custom_call.1} parent=1 // pred_region
      %544 = vsyncadd [#allocation5], 0
      %s546 = sshll.u32 [#allocation6], 4
      %s547 = int_to_ptr.vmem [resolvable:$true] %s546
      %s548 = sshll.u32 %s22, 4
      %s549 = int_to_ptr.hbm [resolvable:$true] %s548
      %551 = dma.vmem_to_hbm [thread:$0]  %s547, 32, %s549, [#allocation5]
    $region93: #{tpu_custom_call.1} parent=1 // pred_fallthru
      _
    // Predicated region
    $region94: #{tpu_custom_call.1} parent=1 // pred_check
      _
    $region95: #{tpu_custom_call.1} parent=1 // pred_check_branch
      %553 = sbr.rel (0) target = $region97
    $region96: #{tpu_custom_call.1} parent=1 // pred_region
      %555 = dma.done [#allocation3], 32
    $region97: #{tpu_custom_call.1} parent=1 // pred_fallthru
      _
    // Predicated region
    $region98: #{tpu_custom_call.1} parent=1 // pred_check
      _
    $region99: #{tpu_custom_call.1} parent=1 // pred_check_branch
      %557 = sbr.rel (0) target = $region101
    $region100: #{tpu_custom_call.1} parent=1 // pred_region
      %559 = dma.done [#allocation5], 32
    $region101: #{tpu_custom_call.1} parent=1 // pred_fallthru
      _
    // Predicated region
    $region102: #{tpu_custom_call.1} parent=1 // pred_check
      _
    $region103: #{tpu_custom_call.1} parent=1 // pred_check_branch
      %561 = sbr.rel (0) target = $region105
    $region104: #{tpu_custom_call.1} parent=1 // pred_region
      %563 = dma.done [#allocation5], 32
    $region105: #{tpu_custom_call.1} parent=1 // pred_fallthru
      _
    %564 = vsyncpa [#allocation3], 1
    %565 = vsyncpa [#allocation5], 1

</llo_original>
